<compile_context>
chip_gen: v7x
topology: tpu7x:2x2x1
jax: 0.10.0
libtpu: 0.0.40
codegen_flags: <defaults>
</compile_context>

<pallas_src>
import functools

import jax
import jax.numpy as jnp
from jax.experimental import pallas as pl
from jax.experimental.pallas import tpu as pltpu


# ---------------------------------------------------------------------------
# Kernels
# ---------------------------------------------------------------------------

def _hidden_kernel(x_ref, w1_ref, b1_ref, h_ref):
    """x: (B, E) bf16, w1: (E, H) bf16, b1: (1, H) f32 -> h: (B, H) bf16."""
    h = jnp.dot(x_ref[...], w1_ref[...], preferred_element_type=jnp.float32)
    # relu(dropout(hidden1(x))); dropout is identity at inference.
    h_ref[...] = jnp.maximum(h + b1_ref[...], 0.0).astype(h_ref.dtype)


def _logits_kernel(h_ref, w2_ref, b2_ref, o_ref):
    """h: (B, H) bf16 (resident), w2: (H, TN) bf16 tile, b2: (1, TN) f32 tile
    -> o: (B, TN) f32 tile.  Pure, independent per-tile GEMM (no carried state)."""
    out = jnp.dot(h_ref[...], w2_ref[...], preferred_element_type=jnp.float32)
    o_ref[...] = (out + b2_ref[...]).astype(o_ref.dtype)


# ---------------------------------------------------------------------------
# Tiling / VMEM helpers
# ---------------------------------------------------------------------------

def _vmem_budget_bytes():
    """Generation-aware VMEM budget: ~75% of physical VMEM, capped at 100 MiB.
    -> ~48 MiB on v7x (64 MiB physical), ~96 MiB on v5e/v6e (128 MiB physical)."""
    try:
        cap = pltpu.get_tpu_info().vmem_capacity_bytes
    except Exception:  # pragma: no cover - conservative fallback
        cap = 64 << 20
    return max(16 << 20, min(int(cap) * 3 // 4, 100 << 20))


def _pick_vocab_tile(V, H, B, budget_bytes, max_tn=8192):
    """Largest TN (multiple of 128, <= max_tn, <= padded V) whose
    double-buffered streaming footprint fits the VMEM budget."""
    v_pad = -(-V // 128) * 128
    best = min(128, v_pad) if v_pad else 128
    tn = 128
    while tn <= min(max_tn, v_pad):
        footprint = (
            2 * (H * tn * 2      # w2 tile, bf16, double buffered
                 + tn * 4        # b2 tile, f32
                 + B * tn * 4)   # output tile, f32
            + 2 * B * H * 2      # resident hidden activation (bf16)
            + (4 << 20)          # headroom for compiler scratch / misc
        )
        if footprint <= budget_bytes:
            best = tn
        tn += 128
    return best


# ---------------------------------------------------------------------------
# Parameter prep (model-load time, OUTSIDE the per-step forward hot path)
# ---------------------------------------------------------------------------

def prepare_params(embedding_matrix, w1, b1, w2, b2):
    """Casts weights once to bf16 (MXU operands) and reshapes biases.
    w1/w2 are expected pre-transposed as [in_features, out_features]."""
    return {
        "emb": embedding_matrix.astype(jnp.bfloat16),   # (vocab, E_tok)
        "w1": w1.astype(jnp.bfloat16),                  # (E, H)
        "b1": b1.reshape(1, -1).astype(jnp.float32),    # (1, H)
        "w2": w2.astype(jnp.bfloat16),                  # (H, V)
        "b2": b2.reshape(1, -1).astype(jnp.float32),    # (1, V)
    }


# ---------------------------------------------------------------------------
# Forward
# ---------------------------------------------------------------------------

@jax.jit
def neural_lm_forward(inputs, params):
    """inputs: int32 (B, ctx).  Returns f32 logits (B, V)."""
    emb, w1, b1, w2, b2 = (params["emb"], params["w1"], params["b1"],
                           params["w2"], params["b2"])
    B, ctx = inputs.shape
    E_tok = emb.shape[1]
    E = ctx * E_tok
    H = w1.shape[1]
    V = w2.shape[1]

    # Embedding lookup + flatten: gather only the needed rows from the
    # already-bf16 table (plain-JAX glue).
    x = jnp.take(emb, inputs, axis=0).reshape(B, E)       # (B, E) bf16

    # ---- GEMM1: tiny single-block kernel, h = relu(x @ w1 + b1) in bf16 ----
    cost1 = pl.CostEstimate(
        flops=2 * B * E * H,
        transcendentals=0,
        bytes_accessed=B * E * 2 + E * H * 2 + H * 4 + B * H * 2,
    )
    h = pl.pallas_call(
        _hidden_kernel,
        out_shape=jax.ShapeDtypeStruct((B, H), jnp.bfloat16),
        grid=(1,),
        in_specs=[
            pl.BlockSpec((B, E), lambda i: (0, 0)),
            pl.BlockSpec((E, H), lambda i: (0, 0)),
            pl.BlockSpec((1, H), lambda i: (0, 0)),
        ],
        out_specs=pl.BlockSpec((B, H), lambda i: (0, 0)),
        compiler_params=pltpu.CompilerParams(
            dimension_semantics=("arbitrary",)),
        cost_estimate=cost1,
    )(x, w1, b1)

    # ---- GEMM2: stream w2 over a parallel vocab-tile grid ----
    budget = _vmem_budget_bytes()
    TN = _pick_vocab_tile(V, H, B, budget)
    grid = (pl.cdiv(V, TN),)

    tile_foot = 2 * (H * TN * 2 + TN * 4 + B * TN * 4) + 2 * B * H * 2
    vmem_limit = int(max(min(tile_foot + (8 << 20), budget), 16 << 20))

    cost2 = pl.CostEstimate(
        flops=2 * B * H * V,
        transcendentals=0,
        bytes_accessed=B * H * 2 + H * V * 2 + V * 4 + B * V * 4,
    )

    out = pl.pallas_call(
        _logits_kernel,
        out_shape=jax.ShapeDtypeStruct((B, V), jnp.float32),
        grid=grid,
        in_specs=[
            pl.BlockSpec((B, H), lambda j: (0, 0)),    # h   (resident)
            pl.BlockSpec((H, TN), lambda j: (0, j)),   # w2  (streamed)
            pl.BlockSpec((1, TN), lambda j: (0, j)),   # b2  (streamed)
        ],
        out_specs=pl.BlockSpec((B, TN), lambda j: (0, j)),
        compiler_params=pltpu.CompilerParams(
            # No carried state across vocab tiles -> safe to megacore-shard
            # the vocab axis across TensorCores (v7x: 2 TCs/chip).
            dimension_semantics=("parallel",),
            vmem_limit_bytes=vmem_limit,
        ),
        cost_estimate=cost2,
    )(h, w2, b2)
    return out


# ---------------------------------------------------------------------------
# References
# ---------------------------------------------------------------------------

def _reference_bf16(inputs, embedding_matrix, w1, b1, w2, b2):
    """Precision-matched reference (bf16 MXU inputs, f32 accumulation)."""
    B = inputs.shape[0]
    x = jnp.take(embedding_matrix.astype(jnp.bfloat16), inputs, axis=0).reshape(B, -1)
    h = jnp.dot(x, w1.astype(jnp.bfloat16), preferred_element_type=jnp.float32) + b1
    h = jnp.maximum(h, 0.0).astype(jnp.bfloat16)
    return jnp.dot(h, w2.astype(jnp.bfloat16), preferred_element_type=jnp.float32) + b2


def _reference_f32(inputs, embedding_matrix, w1, b1, w2, b2):
    B = inputs.shape[0]
    x = jnp.take(embedding_matrix, inputs, axis=0).reshape(B, -1)
    h = jnp.maximum(x @ w1 + b1, 0.0)
    return h @ w2 + b2


# ---------------------------------------------------------------------------
# Demo / self-check
# ---------------------------------------------------------------------------

if __name__ == "__main__":
    # Scaled-down shapes consistent with the module (embedding_dim=1500,
    # hidden_dim=300 in the original):
    #   vocab_size=512, per-token embedding dim=64, context length=3
    #   -> flattened E = 192, hidden H = 128, batch B = 8
    vocab_size = 512
    e_tok = 64
    ctx = 3
    E = ctx * e_tok          # 192
    H = 128
    B = 8

    key = jax.random.PRNGKey(0)
    k_emb, k_w1, k_b1, k_w2, k_b2, k_in = jax.random.split(key, 6)

    embedding_matrix = jax.random.normal(k_emb, (vocab_size, e_tok), jnp.float32) * 0.1
    w1 = jax.random.normal(k_w1, (E, H), jnp.float32) * 0.05           # Linear1 weight^T
    b1 = jax.random.normal(k_b1, (H,), jnp.float32) * 0.05
    w2 = jax.random.normal(k_w2, (H, vocab_size), jnp.float32) * 0.05  # Linear2 weight^T
    b2 = jax.random.normal(k_b2, (vocab_size,), jnp.float32) * 0.05

    inputs = jax.random.randint(k_in, (B, ctx), 0, vocab_size, dtype=jnp.int32)

    params = prepare_params(embedding_matrix, w1, b1, w2, b2)   # one-time bf16 cast
    out = neural_lm_forward(inputs, params)
    out = jax.block_until_ready(out)
    assert out.shape == (B, vocab_size)

    # Tight check against a precision-matched (bf16-input, f32-accum) reference.
    ref_bf16 = _reference_bf16(inputs, embedding_matrix, w1, b1, w2, b2)
    assert jnp.allclose(out, ref_bf16, atol=2e-3, rtol=2e-3), "mismatch vs bf16 reference"

    # Looser sanity check against full-f32 PyTorch-equivalent math.
    ref_f32 = _reference_f32(inputs, embedding_matrix, w1, b1, w2, b2)
    assert jnp.allclose(out, ref_f32, atol=3e-2, rtol=3e-2), "mismatch vs f32 reference"

    print("KERNEL_OK")
</pallas_src>

<mosaic_0001>
module attributes {stable_mosaic.version = 11 : i64} {
  func.func @_hidden_kernel(%arg0: i32, %arg1: memref<8x192xbf16, #tpu.memory_space<vmem>>, %arg2: memref<192x128xbf16, #tpu.memory_space<vmem>>, %arg3: memref<1x128xf32, #tpu.memory_space<vmem>>, %arg4: memref<8x128xbf16, #tpu.memory_space<vmem>>) attributes {dimension_semantics = [#tpu.dimension_semantics<arbitrary>], iteration_bounds = array<i64: 1>, scalar_prefetch = 0 : i64, scratch_operands = 0 : i64, tpu.core_type = #tpu.core_type<tc>, window_params = [{pipeline_mode = #tpu.pipeline_mode<synchronous>, transform_indices = @transform_0, window_bounds = array<i64: 8, 192>}, {pipeline_mode = #tpu.pipeline_mode<synchronous>, transform_indices = @transform_1, window_bounds = array<i64: 192, 128>}, {pipeline_mode = #tpu.pipeline_mode<synchronous>, transform_indices = @transform_2, window_bounds = array<i64: 1, 128>}, {pipeline_mode = #tpu.pipeline_mode<synchronous>, transform_indices = @transform_3, window_bounds = array<i64: 8, 128>}]} {
    %c0 = arith.constant 0 : index
    %c0_0 = arith.constant 0 : index
    %0 = vector.load %arg1[%c0, %c0_0] : memref<8x192xbf16, #tpu.memory_space<vmem>>, vector<8x192xbf16>
    %c0_1 = arith.constant 0 : index
    %c0_2 = arith.constant 0 : index
    %1 = vector.load %arg2[%c0_1, %c0_2] : memref<192x128xbf16, #tpu.memory_space<vmem>>, vector<192x128xbf16>
    %cst = arith.constant dense<0.000000e+00> : vector<8x128xf32>
    %2 = tpu.matmul %0, %1, %cst {dimension_numbers = #tpu.dot_dimension_numbers<[1], [0], [0], [1], [0, 0, 1, 1], [], []>} : vector<8x192xbf16>, vector<192x128xbf16>, vector<8x128xf32> -> vector<8x128xf32>
    %c0_3 = arith.constant 0 : index
    %c0_4 = arith.constant 0 : index
    %3 = vector.load %arg3[%c0_3, %c0_4] : memref<1x128xf32, #tpu.memory_space<vmem>>, vector<1x128xf32>
    %4 = vector.broadcast %3 : vector<1x128xf32> to vector<8x128xf32>
    %5 = arith.addf %2, %4 : vector<8x128xf32>
    %cst_5 = arith.constant 0.000000e+00 : f32
    %6 = vector.broadcast %cst_5 : f32 to vector<8x128xf32>
    %7 = arith.maximumf %5, %6 : vector<8x128xf32>
    %8 = arith.truncf %7 : vector<8x128xf32> to vector<8x128xbf16>
    %c0_6 = arith.constant 0 : index
    %c0_7 = arith.constant 0 : index
    %9 = vector.load %arg4[%c0_6, %c0_7] : memref<8x128xbf16, #tpu.memory_space<vmem>>, vector<8x128xbf16>
    tpu.vector_store %arg4[%c0_6, %c0_7], %8 {strides = array<i32>} : memref<8x128xbf16, #tpu.memory_space<vmem>>, vector<8x128xbf16>,
    return
  }
  func.func @transform_0(%arg0: i32) -> (i32, i32) {
    %c0_i32 = arith.constant 0 : i32
    %c0_i32_0 = arith.constant 0 : i32
    %c0_i32_1 = arith.constant 0 : i32
    return %c0_i32, %c0_i32_0 : i32, i32
  }
  func.func @transform_1(%arg0: i32) -> (i32, i32) {
    %c0_i32 = arith.constant 0 : i32
    %c0_i32_0 = arith.constant 0 : i32
    %c0_i32_1 = arith.constant 0 : i32
    return %c0_i32, %c0_i32_0 : i32, i32
  }
  func.func @transform_2(%arg0: i32) -> (i32, i32) {
    %c0_i32 = arith.constant 0 : i32
    %c0_i32_0 = arith.constant 0 : i32
    %c0_i32_1 = arith.constant 0 : i32
    return %c0_i32, %c0_i32_0 : i32, i32
  }
  func.func @transform_3(%arg0: i32) -> (i32, i32) {
    %c0_i32 = arith.constant 0 : i32
    %c0_i32_0 = arith.constant 0 : i32
    %c0_i32_1 = arith.constant 0 : i32
    return %c0_i32, %c0_i32_0 : i32, i32
  }
}

module attributes {stable_mosaic.version = 11 : i64} {
  func.func @_logits_kernel(%arg0: i32, %arg1: memref<8x128xbf16, #tpu.memory_space<vmem>>, %arg2: memref<128x512xbf16, #tpu.memory_space<vmem>>, %arg3: memref<1x512xf32, #tpu.memory_space<vmem>>, %arg4: memref<8x512xf32, #tpu.memory_space<vmem>>) attributes {dimension_semantics = [#tpu.dimension_semantics<parallel>], iteration_bounds = array<i64: 1>, scalar_prefetch = 0 : i64, scratch_operands = 0 : i64, tpu.core_type = #tpu.core_type<tc>, window_params = [{pipeline_mode = #tpu.pipeline_mode<synchronous>, transform_indices = @transform_0, window_bounds = array<i64: 8, 128>}, {transform_indices = @transform_1, window_bounds = array<i64: 128, 512>}, {transform_indices = @transform_2, window_bounds = array<i64: 1, 512>}, {transform_indices = @transform_3, window_bounds = array<i64: 8, 512>}]} {
    %c0 = arith.constant 0 : index
    %c0_0 = arith.constant 0 : index
    %0 = vector.load %arg1[%c0, %c0_0] : memref<8x128xbf16, #tpu.memory_space<vmem>>, vector<8x128xbf16>
    %c0_1 = arith.constant 0 : index
    %c0_2 = arith.constant 0 : index
    %1 = vector.load %arg2[%c0_1, %c0_2] : memref<128x512xbf16, #tpu.memory_space<vmem>>, vector<128x512xbf16>
    %cst = arith.constant dense<0.000000e+00> : vector<8x512xf32>
    %2 = tpu.matmul %0, %1, %cst {dimension_numbers = #tpu.dot_dimension_numbers<[1], [0], [0], [1], [0, 0, 1, 1], [], []>} : vector<8x128xbf16>, vector<128x512xbf16>, vector<8x512xf32> -> vector<8x512xf32>
    %c0_3 = arith.constant 0 : index
    %c0_4 = arith.constant 0 : index
    %3 = vector.load %arg3[%c0_3, %c0_4] : memref<1x512xf32, #tpu.memory_space<vmem>>, vector<1x512xf32>
    %4 = vector.broadcast %3 : vector<1x512xf32> to vector<8x512xf32>
    %5 = arith.addf %2, %4 : vector<8x512xf32>
    %c0_5 = arith.constant 0 : index
    %c0_6 = arith.constant 0 : index
    %6 = vector.load %arg4[%c0_5, %c0_6] : memref<8x512xf32, #tpu.memory_space<vmem>>, vector<8x512xf32>
    tpu.vector_store %arg4[%c0_5, %c0_6], %5 {strides = array<i32>} : memref<8x512xf32, #tpu.memory_space<vmem>>, vector<8x512xf32>,
    return
  }
  func.func @transform_0(%arg0: i32) -> (i32, i32) {
    %c0_i32 = arith.constant 0 : i32
    %c0_i32_0 = arith.constant 0 : i32
    %c0_i32_1 = arith.constant 0 : i32
    return %c0_i32, %c0_i32_0 : i32, i32
  }
  func.func @transform_1(%arg0: i32) -> (i32, i32) {
    %c0_i32 = arith.constant 0 : i32
    %c0_i32_0 = arith.constant 0 : i32
    return %c0_i32, %arg0 : i32, i32
  }
  func.func @transform_2(%arg0: i32) -> (i32, i32) {
    %c0_i32 = arith.constant 0 : i32
    %c0_i32_0 = arith.constant 0 : i32
    return %c0_i32, %arg0 : i32, i32
  }
  func.func @transform_3(%arg0: i32) -> (i32, i32) {
    %c0_i32 = arith.constant 0 : i32
    %c0_i32_0 = arith.constant 0 : i32
    return %c0_i32, %arg0 : i32, i32
  }
}

</mosaic_0001>

<llo_original>
// kernel: neural_lm_forward.2
$region0: #{neural_lm_forward.2}
  #allocation0 [shape = 'u32[]', space=smem, size = 0x4, offset = 0x4, fixed_abs, tag = 'smem constant byte address 0x4 - core index']
  #allocation1 [shape = 'u32[144,128]{1,0:T(1,128)}', space=vmem, size = 0x12000, scoped, tag = 'internal scratch']
  %s0 = inlined_call_operand.vmem [shape: bf16[8,192], index: 0, kind: input, shape index: {}]
  %s1 = inlined_call_operand.vmem [shape: bf16[192,128], index: 1, kind: input, shape index: {}]
  %s2 = inlined_call_operand.vmem [shape: f32[1,128], index: 2, kind: input, shape index: {}]
  %s3 = inlined_call_operand.vmem [shape: bf16[8,128], index: 3, kind: output, shape index: {}]
  %s4 = sld [smem:[#allocation0]]
  $region22: #{neural_lm_forward.2} parent=0
    _
  %s6 = ssub.s32 1, %s4
  %s7 = scalar_select 0, %s6, %s4
  // Predicated region
  $region2: #{neural_lm_forward.2} parent=0 // pred_check
    _
  $region3: #{neural_lm_forward.2} parent=0 // pred_check_branch
    %9 = sbr.rel (0) target = $region5
  $region4: #{neural_lm_forward.2} parent=0 // pred_region
    _
  $region5: #{neural_lm_forward.2} parent=0 // pred_fallthru
    _
  // Predicated region
  $region6: #{neural_lm_forward.2} parent=0 // pred_check
    _
  $region7: #{neural_lm_forward.2} parent=0 // pred_check_branch
    %11 = sbr.rel (0) target = $region9
  $region8: #{neural_lm_forward.2} parent=0 // pred_region
    _
  $region9: #{neural_lm_forward.2} parent=0 // pred_fallthru
    _
  // Predicated region
  $region10: #{neural_lm_forward.2} parent=0 // pred_check
    _
  $region11: #{neural_lm_forward.2} parent=0 // pred_check_branch
    %13 = sbr.rel (0) target = $region13
  $region12: #{neural_lm_forward.2} parent=0 // pred_region
    _
  $region13: #{neural_lm_forward.2} parent=0 // pred_fallthru
    _
  %v15 = vld [vmem:[%s0] sm:$0xff]
  %v16 = vld [vmem:[%s1] sm:$0xf]
  %v17 = vld [vmem:[%s1 + $0x4] sm:$0xf]
  %v18 = vld [vmem:[%s1 + $0x8] sm:$0xf]
  %v19 = vld [vmem:[%s1 + $0xc] sm:$0xf]
  %v20 = vld [vmem:[%s1 + $0x10] sm:$0xf]
  %v21 = vld [vmem:[%s1 + $0x14] sm:$0xf]
  %v22 = vld [vmem:[%s1 + $0x18] sm:$0xf]
  %v23 = vld [vmem:[%s1 + $0x1c] sm:$0xf]
  %v24 = vld [vmem:[%s1 + $0x20] sm:$0xf]
  %v25 = vld [vmem:[%s1 + $0x24] sm:$0xf]
  %v26 = vld [vmem:[%s1 + $0x28] sm:$0xf]
  %v27 = vld [vmem:[%s1 + $0x2c] sm:$0xf]
  %v28 = vld [vmem:[%s1 + $0x30] sm:$0xf]
  %v29 = vld [vmem:[%s1 + $0x34] sm:$0xf]
  %v30 = vld [vmem:[%s1 + $0x38] sm:$0xf]
  %v31 = vld [vmem:[%s1 + $0x3c] sm:$0xf]
  %v32 = vld [vmem:[%s1 + $0x40] sm:$0xf]
  %v33 = vld [vmem:[%s1 + $0x44] sm:$0xf]
  %v34 = vld [vmem:[%s1 + $0x48] sm:$0xf]
  %v35 = vld [vmem:[%s1 + $0x4c] sm:$0xf]
  %v36 = vld [vmem:[%s1 + $0x50] sm:$0xf]
  %v37 = vld [vmem:[%s1 + $0x54] sm:$0xf]
  %v38 = vld [vmem:[%s1 + $0x58] sm:$0xf]
  %v39 = vld [vmem:[%s1 + $0x5c] sm:$0xf]
  %v40 = vld [vmem:[%s2] sm:$0x1]
  %v42 = vlaneseq
  %v43 = vshrl.u32 %v42, 7
  %v44 = vsub.s32 0, %v43
  %v45 = vrot.slane %v40, %v44
  %v48 = vunpack.c.l.b16 %v15
  %v49 = vunpack.c.h.b16 %v15
  %v50 = vpack.c.b16 %v48, %v48
  %v51 = vpack.c.b16 %v49, %v49
  %v77 = vunpack.c.l.b16 %v16
  %v78 = vunpack.c.l.b16 %v17
  %v79 = vunpack.c.l.b16 %v18
  %v80 = vunpack.c.l.b16 %v19
  %v81 = vunpack.c.l.b16 %v20
  %v82 = vunpack.c.l.b16 %v21
  %v83 = vunpack.c.l.b16 %v22
  %v84 = vunpack.c.l.b16 %v23
  %v85 = vunpack.c.l.b16 %v24
  %v86 = vunpack.c.l.b16 %v25
  %v87 = vunpack.c.l.b16 %v26
  %v88 = vunpack.c.l.b16 %v27
  %v89 = vunpack.c.l.b16 %v28
  %v90 = vunpack.c.l.b16 %v29
  %v91 = vunpack.c.l.b16 %v30
  %v92 = vunpack.c.l.b16 %v31
  %v93 = vunpack.c.l.b16 %v32
  %v94 = vunpack.c.l.b16 %v33
  %v95 = vunpack.c.l.b16 %v34
  %v96 = vunpack.c.l.b16 %v35
  %v97 = vunpack.c.l.b16 %v36
  %v98 = vunpack.c.l.b16 %v37
  %v99 = vunpack.c.l.b16 %v38
  %v100 = vunpack.c.l.b16 %v39
  %v101 = vpack.c.b16 %v78, %v77
  %v102 = vpack.c.b16 %v80, %v79
  %v103 = vpack.c.b16 %v82, %v81
  %v104 = vpack.c.b16 %v84, %v83
  %v105 = vpack.c.b16 %v86, %v85
  %v106 = vpack.c.b16 %v88, %v87
  %v107 = vpack.c.b16 %v90, %v89
  %v108 = vpack.c.b16 %v92, %v91
  %v109 = vpack.c.b16 %v94, %v93
  %v110 = vpack.c.b16 %v96, %v95
  %v111 = vpack.c.b16 %v98, %v97
  %v112 = vpack.c.b16 %v100, %v99
  %vm125 = vcmask 523264
  %v127 = vsel %vm125, %v51, 0
  %129 = vmatprep.subr.bf16.mxu0 0
  %130 = vmatpush1.bf16.msra.mxu0 %v101
  %131 = vmatprep.subr.bf16.mxu0 0
  %132 = vmatpush1.bf16.msra.mxu0 %v102
  %133 = vmatprep.subr.bf16.mxu0 0
  %134 = vmatpush1.bf16.msra.mxu0 %v103
  %135 = vmatprep.subr.bf16.mxu0 0
  %136 = vmatpush1.bf16.msra.mxu0 %v104
  %137 = vmatprep.subr.bf16.mxu0 0
  %138 = vmatpush1.bf16.msra.mxu0 %v105
  %139 = vmatprep.subr.bf16.mxu0 0
  %140 = vmatpush1.bf16.msra.mxu0 %v106
  %141 = vmatprep.subr.bf16.mxu0 0
  %142 = vmatpush1.bf16.msra.mxu0 %v107
  %143 = vmatprep.subr.bf16.mxu0 0
  %144 = vmatpush1.bf16.msra.mxu0 %v108
  %145 = vmatprep.subr.bf16.mxu0 0
  %146 = vmatpush1.bf16.msra.mxu0 %v109
  %147 = vmatprep.subr.bf16.mxu0 0
  %148 = vmatpush1.bf16.msra.mxu0 %v110
  %149 = vmatprep.subr.bf16.mxu0 0
  %150 = vmatpush1.bf16.msra.mxu0 %v111
  %151 = vmatprep.subr.bf16.mxu0 0
  %152 = vmatpush1.bf16.msra.mxu0 %v112
  %153 = vmatprep.subr.bf16.mxu0 0
  %154 = vmatpush1.bf16.msra.mxu0 0
  %155 = vmatprep.subr.bf16.mxu0 0
  %156 = vmatpush1.bf16.msra.mxu0 0
  %157 = vmatprep.subr.bf16.mxu0 0
  %158 = vmatpush1.bf16.msra.mxu0 0
  %159 = vmatprep.subr.bf16.mxu0 0
  %160 = vmatpush1.bf16.msra.mxu0 0
  %161 = vmatprep.mubr.bf16.mxu0 %v127
  %162 = vmatmul.mubr.bf16.gmra.mrb[0].mxu0 %v50
  %v163 = vpop.f32.mrb[0].mxu0
  %v164 = vadd.f32 %v45, %v163
  %v165 = vpop.f32.mrb[0].mxu0
  %v166 = vpop.f32.mrb[0].mxu0
  %v167 = vpop.f32.mrb[0].mxu0
  %168 = vdwg.mxu0
  %v169 = vmax.f32 %v164, 0.0
  %v170 = vpack.c.bf16 %v169, %v169
  %171 = vst [vmem:[%s3] sm:$0xf] %v170
  // Predicated region
  $region14: #{neural_lm_forward.2} parent=0 // pred_check
    _
  $region15: #{neural_lm_forward.2} parent=0 // pred_check_branch
    %173 = sbr.rel (0) target = $region17
  $region16: #{neural_lm_forward.2} parent=0 // pred_region
    _
  $region17: #{neural_lm_forward.2} parent=0 // pred_fallthru
    _
  // Predicated region
  $region18: #{neural_lm_forward.2} parent=0 // pred_check
    _
  $region19: #{neural_lm_forward.2} parent=0 // pred_check_branch
    %175 = sbr.rel (0) target = $region21
  $region20: #{neural_lm_forward.2} parent=0 // pred_region
    _
  $region21: #{neural_lm_forward.2} parent=0 // pred_fallthru
    _

// kernel: neural_lm_forward.3
$region0: #{neural_lm_forward.3}
  #allocation0 [shape = 'u32[]', space=smem, size = 0x4, offset = 0x4, fixed_abs, tag = 'smem constant byte address 0x4 - core index']
  #allocation1 [shape = 'u32[144,128]{1,0:T(1,128)}', space=vmem, size = 0x12000, scoped, tag = 'internal scratch']
  %s0 = inlined_call_operand.vmem [shape: bf16[8,128], index: 0, kind: input, shape index: {}]
  %s1 = inlined_call_operand.vmem [shape: bf16[128,512], index: 1, kind: input, shape index: {}]
  %s2 = inlined_call_operand.vmem [shape: f32[1,512], index: 2, kind: input, shape index: {}]
  %s3 = inlined_call_operand.hbm [shape: f32[8,512], index: 3, kind: output, shape index: {}]
  %s4 = sld [smem:[#allocation0]]
  $region22: #{neural_lm_forward.3} parent=0
    _
  %s6 = ssub.s32 1, %s4
  %s7 = scalar_select 0, %s6, %s4
  $region1: #{neural_lm_forward.3} parent=0
    #allocation2 [shape = 'u8[16384]{0}', space=vmem, size = 0x4000, scoped, tag = 'output window, operand 0, single buffered']
    #allocation3 [shape = 's32[1]{0}', space=sflag, size = 0x4, scoped, tag = 'scoped memory for neural_lm_forward.3']
    %8 = vsyncpa [#allocation3], 0
    // Predicated region
    $region2: #{neural_lm_forward.3} parent=1 // pred_check
      _
    $region3: #{neural_lm_forward.3} parent=1 // pred_check_branch
      %10 = sbr.rel (0) target = $region5
    $region4: #{neural_lm_forward.3} parent=1 // pred_region
      _
    $region5: #{neural_lm_forward.3} parent=1 // pred_fallthru
      _
    // Predicated region
    $region6: #{neural_lm_forward.3} parent=1 // pred_check
      _
    $region7: #{neural_lm_forward.3} parent=1 // pred_check_branch
      %12 = sbr.rel (0) target = $region9
    $region8: #{neural_lm_forward.3} parent=1 // pred_region
      _
    $region9: #{neural_lm_forward.3} parent=1 // pred_fallthru
      _
    // Predicated region
    $region10: #{neural_lm_forward.3} parent=1 // pred_check
      _
    $region11: #{neural_lm_forward.3} parent=1 // pred_check_branch
      %14 = sbr.rel (0) target = $region13
    $region12: #{neural_lm_forward.3} parent=1 // pred_region
      _
    $region13: #{neural_lm_forward.3} parent=1 // pred_fallthru
      _
    %v16 = vld [vmem:[%s0] sm:$0xf]
    %v17 = vld [vmem:[%s1] sm:$0xff]
    %v18 = vld [vmem:[%s1 + $0x8] sm:$0xff]
    %v19 = vld [vmem:[%s1 + $0x10] sm:$0xff]
    %v20 = vld [vmem:[%s1 + $0x18] sm:$0xff]
    %v21 = vld [vmem:[%s1 + $0x20] sm:$0xff]
    %v22 = vld [vmem:[%s1 + $0x28] sm:$0xff]
    %v23 = vld [vmem:[%s1 + $0x30] sm:$0xff]
    %v24 = vld [vmem:[%s1 + $0x38] sm:$0xff]
    %v25 = vld [vmem:[%s1 + $0x40] sm:$0xff]
    %v26 = vld [vmem:[%s1 + $0x48] sm:$0xff]
    %v27 = vld [vmem:[%s1 + $0x50] sm:$0xff]
    %v28 = vld [vmem:[%s1 + $0x58] sm:$0xff]
    %v29 = vld [vmem:[%s1 + $0x60] sm:$0xff]
    %v30 = vld [vmem:[%s1 + $0x68] sm:$0xff]
    %v31 = vld [vmem:[%s1 + $0x70] sm:$0xff]
    %v32 = vld [vmem:[%s1 + $0x78] sm:$0xff]
    %v33 = vld [vmem:[%s1 + $0x80] sm:$0xff]
    %v34 = vld [vmem:[%s1 + $0x88] sm:$0xff]
    %v35 = vld [vmem:[%s1 + $0x90] sm:$0xff]
    %v36 = vld [vmem:[%s1 + $0x98] sm:$0xff]
    %v37 = vld [vmem:[%s1 + $0xa0] sm:$0xff]
    %v38 = vld [vmem:[%s1 + $0xa8] sm:$0xff]
    %v39 = vld [vmem:[%s1 + $0xb0] sm:$0xff]
    %v40 = vld [vmem:[%s1 + $0xb8] sm:$0xff]
    %v41 = vld [vmem:[%s1 + $0xc0] sm:$0xff]
    %v42 = vld [vmem:[%s1 + $0xc8] sm:$0xff]
    %v43 = vld [vmem:[%s1 + $0xd0] sm:$0xff]
    %v44 = vld [vmem:[%s1 + $0xd8] sm:$0xff]
    %v45 = vld [vmem:[%s1 + $0xe0] sm:$0xff]
    %v46 = vld [vmem:[%s1 + $0xe8] sm:$0xff]
    %v47 = vld [vmem:[%s1 + $0xf0] sm:$0xff]
    %v48 = vld [vmem:[%s1 + $0xf8] sm:$0xff]
    %v49 = vld [vmem:[%s2] sm:$0xf]
    %v51 = vlaneseq
    %v52 = vshrl.u32 %v51, 7
    %v53 = vsub.s32 0, %v52
    %v54 = vrot.slane %v49, %v53
    %v55 = vlaneseq
    %v56 = vshrl.u32 %v55, 7
    %v57 = vsub.s32 1, %v56
    %v58 = vrot.slane %v49, %v57
    %v59 = vlaneseq
    %v60 = vshrl.u32 %v59, 7
    %v61 = vsub.s32 2, %v60
    %v62 = vrot.slane %v49, %v61
    %v63 = vlaneseq
    %v64 = vshrl.u32 %v63, 7
    %v65 = vsub.s32 3, %v64
    %v66 = vrot.slane %v49, %v65
    %v103 = vunpack.c.l.b16 %v17
    %v104 = vunpack.c.h.b16 %v17
    %v105 = vunpack.c.l.b16 %v18
    %v106 = vunpack.c.h.b16 %v18
    %v107 = vunpack.c.l.b16 %v19
    %v108 = vunpack.c.h.b16 %v19
    %v109 = vunpack.c.l.b16 %v20
    %v110 = vunpack.c.h.b16 %v20
    %v111 = vunpack.c.l.b16 %v21
    %v112 = vunpack.c.h.b16 %v21
    %v113 = vunpack.c.l.b16 %v22
    %v114 = vunpack.c.h.b16 %v22
    %v115 = vunpack.c.l.b16 %v23
    %v116 = vunpack.c.h.b16 %v23
    %v117 = vunpack.c.l.b16 %v24
    %v118 = vunpack.c.h.b16 %v24
    %v119 = vunpack.c.l.b16 %v25
    %v120 = vunpack.c.h.b16 %v25
    %v121 = vunpack.c.l.b16 %v26
    %v122 = vunpack.c.h.b16 %v26
    %v123 = vunpack.c.l.b16 %v27
    %v124 = vunpack.c.h.b16 %v27
    %v125 = vunpack.c.l.b16 %v28
    %v126 = vunpack.c.h.b16 %v28
    %v127 = vunpack.c.l.b16 %v29
    %v128 = vunpack.c.h.b16 %v29
    %v129 = vunpack.c.l.b16 %v30
    %v130 = vunpack.c.h.b16 %v30
    %v131 = vunpack.c.l.b16 %v31
    %v132 = vunpack.c.h.b16 %v31
    %v133 = vunpack.c.l.b16 %v32
    %v134 = vunpack.c.h.b16 %v32
    %v135 = vunpack.c.l.b16 %v33
    %v136 = vunpack.c.h.b16 %v33
    %v137 = vunpack.c.l.b16 %v34
    %v138 = vunpack.c.h.b16 %v34
    %v139 = vunpack.c.l.b16 %v35
    %v140 = vunpack.c.h.b16 %v35
    %v141 = vunpack.c.l.b16 %v36
    %v142 = vunpack.c.h.b16 %v36
    %v143 = vunpack.c.l.b16 %v37
    %v144 = vunpack.c.h.b16 %v37
    %v145 = vunpack.c.l.b16 %v38
    %v146 = vunpack.c.h.b16 %v38
    %v147 = vunpack.c.l.b16 %v39
    %v148 = vunpack.c.h.b16 %v39
    %v149 = vunpack.c.l.b16 %v40
    %v150 = vunpack.c.h.b16 %v40
    %v151 = vunpack.c.l.b16 %v41
    %v152 = vunpack.c.h.b16 %v41
    %v153 = vunpack.c.l.b16 %v42
    %v154 = vunpack.c.h.b16 %v42
    %v155 = vunpack.c.l.b16 %v43
    %v156 = vunpack.c.h.b16 %v43
    %v157 = vunpack.c.l.b16 %v44
    %v158 = vunpack.c.h.b16 %v44
    %v159 = vunpack.c.l.b16 %v45
    %v160 = vunpack.c.h.b16 %v45
    %v161 = vunpack.c.l.b16 %v46
    %v162 = vunpack.c.h.b16 %v46
    %v163 = vunpack.c.l.b16 %v47
    %v164 = vunpack.c.h.b16 %v47
    %v165 = vunpack.c.l.b16 %v48
    %v166 = vunpack.c.h.b16 %v48
    %v167 = vpack.c.b16 %v107, %v103
    %v168 = vpack.c.b16 %v108, %v104
    %v169 = vpack.c.b16 %v109, %v105
    %v170 = vpack.c.b16 %v110, %v106
    %v171 = vpack.c.b16 %v115, %v111
    %v172 = vpack.c.b16 %v116, %v112
    %v173 = vpack.c.b16 %v117, %v113
    %v174 = vpack.c.b16 %v118, %v114
    %v175 = vpack.c.b16 %v123, %v119
    %v176 = vpack.c.b16 %v124, %v120
    %v177 = vpack.c.b16 %v125, %v121
    %v178 = vpack.c.b16 %v126, %v122
    %v179 = vpack.c.b16 %v131, %v127
    %v180 = vpack.c.b16 %v132, %v128
    %v181 = vpack.c.b16 %v133, %v129
    %v182 = vpack.c.b16 %v134, %v130
    %v183 = vpack.c.b16 %v139, %v135
    %v184 = vpack.c.b16 %v140, %v136
    %v185 = vpack.c.b16 %v141, %v137
    %v186 = vpack.c.b16 %v142, %v138
    %v187 = vpack.c.b16 %v147, %v143
    %v188 = vpack.c.b16 %v148, %v144
    %v189 = vpack.c.b16 %v149, %v145
    %v190 = vpack.c.b16 %v150, %v146
    %v191 = vpack.c.b16 %v155, %v151
    %v192 = vpack.c.b16 %v156, %v152
    %v193 = vpack.c.b16 %v157, %v153
    %v194 = vpack.c.b16 %v158, %v154
    %v195 = vpack.c.b16 %v163, %v159
    %v196 = vpack.c.b16 %v164, %v160
    %v197 = vpack.c.b16 %v165, %v161
    %v198 = vpack.c.b16 %v166, %v162
    %231 = vmatprep.subr.bf16.mxu0 %v168
    %232 = vmatpush1.bf16.msra.mxu0 %v167
    %233 = vmatprep.subr.bf16.mxu0 %v172
    %234 = vmatpush1.bf16.msra.mxu0 %v171
    %235 = vmatprep.subr.bf16.mxu0 %v176
    %236 = vmatpush1.bf16.msra.mxu0 %v175
    %237 = vmatprep.subr.bf16.mxu0 %v180
    %238 = vmatpush1.bf16.msra.mxu0 %v179
    %239 = vmatprep.subr.bf16.mxu0 %v184
    %240 = vmatpush1.bf16.msra.mxu0 %v183
    %241 = vmatprep.subr.bf16.mxu0 %v188
    %242 = vmatpush1.bf16.msra.mxu0 %v187
    %243 = vmatprep.subr.bf16.mxu0 %v192
    %244 = vmatpush1.bf16.msra.mxu0 %v191
    %245 = vmatprep.subr.bf16.mxu0 %v196
    %246 = vmatpush1.bf16.msra.mxu0 %v195
    %247 = vmatprep.subr.bf16.mxu0 0
    %248 = vmatpush1.bf16.msra.mxu0 0
    %249 = vmatprep.subr.bf16.mxu0 0
    %250 = vmatpush1.bf16.msra.mxu0 0
    %251 = vmatprep.subr.bf16.mxu0 0
    %252 = vmatpush1.bf16.msra.mxu0 0
    %253 = vmatprep.subr.bf16.mxu0 0
    %254 = vmatpush1.bf16.msra.mxu0 0
    %255 = vmatprep.subr.bf16.mxu0 0
    %256 = vmatpush1.bf16.msra.mxu0 0
    %257 = vmatprep.subr.bf16.mxu0 0
    %258 = vmatpush1.bf16.msra.mxu0 0
    %259 = vmatprep.subr.bf16.mxu0 0
    %260 = vmatpush1.bf16.msra.mxu0 0
    %261 = vmatprep.subr.bf16.mxu0 0
    %262 = vmatpush1.bf16.msra.mxu0 0
    %263 = vmatprep.mubr.bf16.mxu0 0
    %264 = vmatmul.mubr.bf16.gmra.mrb[0].mxu0 %v16
    %v265 = vpop.f32.mrb[0].mxu0
    %v266 = vadd.f32 %v54, %v265
    %v267 = vpop.f32.mrb[0].mxu0
    %v268 = vadd.f32 %v58, %v267
    %v269 = vpop.f32.mrb[0].mxu0
    %v270 = vpop.f32.mrb[0].mxu0
    %271 = vdwg.mxu0
    %272 = vmatprep.subr.bf16.mxu0 %v170
    %273 = vmatpush1.bf16.msra.mxu0 %v169
    %274 = vmatprep.subr.bf16.mxu0 %v174
    %275 = vmatpush1.bf16.msra.mxu0 %v173
    %276 = vmatprep.subr.bf16.mxu0 %v178
    %277 = vmatpush1.bf16.msra.mxu0 %v177
    %278 = vmatprep.subr.bf16.mxu0 %v182
    %279 = vmatpush1.bf16.msra.mxu0 %v181
    %280 = vmatprep.subr.bf16.mxu0 %v186
    %281 = vmatpush1.bf16.msra.mxu0 %v185
    %282 = vmatprep.subr.bf16.mxu0 %v190
    %283 = vmatpush1.bf16.msra.mxu0 %v189
    %284 = vmatprep.subr.bf16.mxu0 %v194
    %285 = vmatpush1.bf16.msra.mxu0 %v193
    %286 = vmatprep.subr.bf16.mxu0 %v198
    %287 = vmatpush1.bf16.msra.mxu0 %v197
    %288 = vmatprep.subr.bf16.mxu0 0
    %289 = vmatpush1.bf16.msra.mxu0 0
    %290 = vmatprep.subr.bf16.mxu0 0
    %291 = vmatpush1.bf16.msra.mxu0 0
    %292 = vmatprep.subr.bf16.mxu0 0
    %293 = vmatpush1.bf16.msra.mxu0 0
    %294 = vmatprep.subr.bf16.mxu0 0
    %295 = vmatpush1.bf16.msra.mxu0 0
    %296 = vmatprep.subr.bf16.mxu0 0
    %297 = vmatpush1.bf16.msra.mxu0 0
    %298 = vmatprep.subr.bf16.mxu0 0
    %299 = vmatpush1.bf16.msra.mxu0 0
    %300 = vmatprep.subr.bf16.mxu0 0
    %301 = vmatpush1.bf16.msra.mxu0 0
    %302 = vmatprep.subr.bf16.mxu0 0
    %303 = vmatpush1.bf16.msra.mxu0 0
    %304 = vmatprep.mubr.bf16.mxu0 0
    %305 = vmatmul.mubr.bf16.gmra.mrb[0].mxu0 %v16
    %v306 = vpop.f32.mrb[0].mxu0
    %v307 = vadd.f32 %v62, %v306
    %v308 = vpop.f32.mrb[0].mxu0
    %v309 = vadd.f32 %v66, %v308
    %v310 = vpop.f32.mrb[0].mxu0
    %v311 = vpop.f32.mrb[0].mxu0
    %312 = vdwg.mxu0
    %313 = vst [vmem:[#allocation2] sm:$0xff] %v266
    %314 = vst [vmem:[#allocation2 + $0x8] sm:$0xff] %v268
    %315 = vst [vmem:[#allocation2 + $0x10] sm:$0xff] %v307
    %316 = vst [vmem:[#allocation2 + $0x18] sm:$0xff] %v309
    // Predicated region
    $region14: #{neural_lm_forward.3} parent=1 // pred_check
      _
    $region15: #{neural_lm_forward.3} parent=1 // pred_check_branch
      %318 = sbr.rel (0) target = $region17
    $region16: #{neural_lm_forward.3} parent=1 // pred_region
      %s320 = ssub.s32 512, 512
      %321 = vsyncadd [#allocation3], %s320
      %s323 = sshll.u32 [#allocation2], 4
      %s324 = int_to_ptr.vmem [resolvable:$true] %s323
      %326 = dma.vmem_to_hbm [thread:$0]  %s324, 512, %s3, [#allocation3]
    $region17: #{neural_lm_forward.3} parent=1 // pred_fallthru
      _
    // Predicated region
    $region18: #{neural_lm_forward.3} parent=1 // pred_check
      _
    $region19: #{neural_lm_forward.3} parent=1 // pred_check_branch
      %328 = sbr.rel (0) target = $region21
    $region20: #{neural_lm_forward.3} parent=1 // pred_region
      %329 = dma.done [#allocation3], 512
    $region21: #{neural_lm_forward.3} parent=1 // pred_fallthru
      _
    %330 = vsyncpa [#allocation3], 1

</llo_original>
